<compile_context>
chip_gen: v7x
topology: tpu7x:2x2x1
jax: 0.10.0
libtpu: 0.0.40
codegen_flags: <defaults>
</compile_context>

<pallas_src>
import functools
import math

import jax
import jax.numpy as jnp
from jax.experimental import pallas as pl
from jax.experimental.pallas import tpu as pltpu


def _relux_kernel(x_ref, o_ref, *, scale: float, inv_scale: float, dt: float):
    x = x_ref[...]
    # relu6(x * scale) * (1/scale) -- divide folded to a constant multiply.
    y = jnp.clip(x * scale, 0.0, 6.0) * inv_scale
    if dt > 0.0:  # trace-time specialization: for dt <= 0 the clamp is a no-op
        y = jnp.maximum(y, jnp.asarray(dt, dtype=y.dtype))
    o_ref[...] = y


def _relux_math(x, scale: float, inv_scale: float, dt: float):
    """Plain-jnp fallback for tiny / ragged tails (XLA fuses this)."""
    y = jnp.clip(x * scale, 0.0, 6.0) * inv_scale
    if dt > 0.0:
        y = jnp.maximum(y, jnp.asarray(dt, dtype=y.dtype))
    return y


def _vmem_budget():
    """Per-generation block size + scoped-VMEM limit from the actual chip."""
    try:
        vmem = int(pltpu.get_tpu_info().vmem_capacity_bytes)
    except Exception:
        vmem = 64 << 20  # conservative: v7x has the smallest VMEM per TC
    # 4 live buffers (2-deep in + 2-deep out) kept under ~40% of physical VMEM.
    block_bytes = min(8 << 20, max(2 << 20, (vmem * 2 // 5) // 4))
    vmem_limit = min(vmem * 3 // 4, 4 * block_bytes + (16 << 20))
    return block_bytes, vmem_limit


def relux(x: jnp.ndarray, max_value: float = 1.0, dt: float = 0.0) -> jnp.ndarray:
    """Applies ReLUX elementwise to any-shaped float array (e.g. NCHW)."""
    max_value = float(max_value)  # assumed > 0 (matches the PyTorch module)
    dt = float(dt)
    scale = 6.0 / max_value
    inv_scale = max_value / 6.0

    orig_shape = x.shape
    dtype = x.dtype
    total = math.prod(orig_shape)
    if total == 0:
        return x
    itemsize = jnp.dtype(dtype).itemsize
    sub = max(8, 32 // itemsize)  # sublane quantum: 8 f32, 16 bf16, 32 i8

    # Lane-dense last dim that divides total whenever possible (no pad/slice).
    lanes = None
    for cand in (512, 256, 128):
        if total % cand == 0:
            lanes = cand
            break

    flat = x.reshape(-1)
    if lanes is None:
        lanes = 512
        main = (total // lanes) * lanes   # lane-aligned prefix for the kernel
    else:
        main = total

    if main == 0:
        # Tiny ragged input: nothing lane-aligned to feed the kernel.
        return _relux_math(flat, scale, inv_scale, dt).reshape(orig_shape)

    rows = main // lanes
    block_bytes, vmem_limit = _vmem_budget()
    row_bytes = lanes * itemsize
    max_tile_rows = max(sub, (block_bytes // row_bytes) // sub * sub)

    if rows <= max_tile_rows:
        slab_bytes = rows * row_bytes
        if slab_bytes > (2 << 20) and rows >= 2 * sub:
            # >=2 blocks so both v7x TensorCores stream; harmless on 1-TC chips.
            row_tile = min(max_tile_rows, pl.cdiv(pl.cdiv(rows, 2), sub) * sub)
        else:
            # Single block == full array dims: no alignment constraint, no
            # pipelining overhead for small inputs.
            row_tile = rows
    else:
        # (8,128)-aligned tile; the final block may be partial (masked store on
        # that one block only -- no row padding / output slicing needed).
        row_tile = max_tile_rows

    grid = pl.cdiv(rows, row_tile)
    x2d = (flat[:main] if main != total else flat).reshape(rows, lanes)

    kernel = functools.partial(_relux_kernel, scale=scale,
                               inv_scale=inv_scale, dt=dt)

    out2d = pl.pallas_call(
        kernel,
        out_shape=jax.ShapeDtypeStruct((rows, lanes), dtype),
        grid_spec=pl.GridSpec(
            grid=(grid,),
            in_specs=[pl.BlockSpec((row_tile, lanes), lambda i: (i, 0))],
            out_specs=pl.BlockSpec((row_tile, lanes), lambda i: (i, 0)),
        ),
        compiler_params=pltpu.CompilerParams(
            dimension_semantics=("parallel",),
            vmem_limit_bytes=vmem_limit,
        ),
    )(x2d)

    out_flat = out2d.reshape(-1)
    if main != total:
        tail = _relux_math(flat[main:], scale, inv_scale, dt)
        out_flat = jnp.concatenate([out_flat, tail])
    return out_flat.reshape(orig_shape)


def relux_ref(x, max_value=1.0, dt=0.0):
    scale = 6.0 / float(max_value)
    out = jnp.clip(x * scale, 0.0, 6.0) / scale
    return jnp.maximum(out, dt)


if __name__ == "__main__":
    key = jax.random.PRNGKey(0)
    # NCHW input, small shapes (batch=2, channels=4, spatial=16)
    x = jax.random.normal(key, (2, 4, 16, 16), dtype=jnp.float32) * 2.0

    max_value = 1.0
    dt = 0.0

    out = jax.block_until_ready(relux(x, max_value=max_value, dt=dt))
    ref = relux_ref(x, max_value=max_value, dt=dt)

    assert out.shape == x.shape and out.dtype == x.dtype
    assert jnp.allclose(out, ref, atol=1e-6, rtol=1e-6)

    # Exercise a ragged-size path too (total not a multiple of row_tile*lanes).
    x2 = jax.random.normal(key, (3, 5, 7, 11), dtype=jnp.float32)
    out2 = jax.block_until_ready(relux(x2, max_value=2.0, dt=0.1))
    ref2 = relux_ref(x2, max_value=2.0, dt=0.1)
    assert jnp.allclose(out2, ref2, atol=1e-6, rtol=1e-6)

    print("KERNEL_OK")
</pallas_src>

<mosaic_0001>
module attributes {stable_mosaic.version = 11 : i64} {
  func.func @_relux_kernel(%arg0: i32, %arg1: memref<4x512xf32, #tpu.memory_space<vmem>>, %arg2: memref<4x512xf32, #tpu.memory_space<vmem>>) attributes {dimension_semantics = [#tpu.dimension_semantics<parallel>], iteration_bounds = array<i64: 1>, scalar_prefetch = 0 : i64, scratch_operands = 0 : i64, tpu.core_type = #tpu.core_type<tc>, window_params = [{transform_indices = @transform_0, window_bounds = array<i64: 4, 512>}, {transform_indices = @transform_1, window_bounds = array<i64: 4, 512>}]} {
    %c0 = arith.constant 0 : index
    %c0_0 = arith.constant 0 : index
    %0 = vector.load %arg1[%c0, %c0_0] : memref<4x512xf32, #tpu.memory_space<vmem>>, vector<4x512xf32>
    %cst = arith.constant 6.000000e+00 : f32
    %1 = vector.broadcast %cst : f32 to vector<4x512xf32>
    %2 = arith.mulf %0, %1 : vector<4x512xf32>
    %cst_1 = arith.constant 0.000000e+00 : f32
    %cst_2 = arith.constant 6.000000e+00 : f32
    %3 = vector.broadcast %cst_1 : f32 to vector<4x512xf32>
    %4 = arith.maximumf %3, %2 : vector<4x512xf32>
    %5 = vector.broadcast %cst_2 : f32 to vector<4x512xf32>
    %6 = arith.minimumf %5, %4 : vector<4x512xf32>
    %cst_3 = arith.constant 0.166666672 : f32
    %7 = vector.broadcast %cst_3 : f32 to vector<4x512xf32>
    %8 = arith.mulf %6, %7 : vector<4x512xf32>
    %c0_4 = arith.constant 0 : index
    %c0_5 = arith.constant 0 : index
    %9 = vector.load %arg2[%c0_4, %c0_5] : memref<4x512xf32, #tpu.memory_space<vmem>>, vector<4x512xf32>
    tpu.vector_store %arg2[%c0_4, %c0_5], %8 {strides = array<i32>} : memref<4x512xf32, #tpu.memory_space<vmem>>, vector<4x512xf32>,
    return
  }
  func.func @transform_0(%arg0: i32) -> (i32, i32) {
    %c0_i32 = arith.constant 0 : i32
    %c0_i32_0 = arith.constant 0 : i32
    return %arg0, %c0_i32 : i32, i32
  }
  func.func @transform_1(%arg0: i32) -> (i32, i32) {
    %c0_i32 = arith.constant 0 : i32
    %c0_i32_0 = arith.constant 0 : i32
    return %arg0, %c0_i32 : i32, i32
  }
}

</mosaic_0001>

<llo_original>
// kernel: tpu_custom_call.1
$region0: #{tpu_custom_call.1}
  #allocation0 [shape = 'u32[]', space=smem, size = 0x4, offset = 0x4, fixed_abs, tag = 'smem constant byte address 0x4 - core index']
  #allocation1 [shape = 'u32[144,128]{1,0:T(1,128)}', space=vmem, size = 0x12000, scoped, tag = 'internal scratch']
  %s0 = inlined_call_operand.hbm [shape: f32[4,512], index: 0, kind: input, shape index: {}]
  %s1 = inlined_call_operand.hbm [shape: f32[4,512], index: 1, kind: output, shape index: {}]
  %s2 = sld [smem:[#allocation0]]
  $region18: #{tpu_custom_call.1} parent=0
    _
  %s4 = ssub.s32 1, %s2
  %s5 = scalar_select 0, %s4, %s2
  $region1: #{tpu_custom_call.1} parent=0
    #allocation2 [shape = 'u8[8192]{0}', space=vmem, size = 0x2000, scoped, tag = 'input window, operand 0, single buffered']
    #allocation3 [shape = 's32[1]{0}', space=sflag, size = 0x4, scoped, tag = 'scoped memory for tpu_custom_call.1']
    #allocation4 [shape = 's32[1]{0}', space=sflag, size = 0x4, scoped, tag = 'scoped memory for tpu_custom_call.1']
    #allocation5 [shape = 'u8[8192]{0}', space=vmem, size = 0x2000, scoped, tag = 'output window, operand 0, single buffered']
    %6 = vsyncpa [#allocation3], 0
    %7 = vsyncpa [#allocation4], 0
    // Predicated region
    $region2: #{tpu_custom_call.1} parent=1 // pred_check
      _
    $region3: #{tpu_custom_call.1} parent=1 // pred_check_branch
      %9 = sbr.rel (0) target = $region5
    $region4: #{tpu_custom_call.1} parent=1 // pred_region
      %s11 = ssub.s32 256, 256
      %12 = vsyncadd [#allocation3], %s11
      %s14 = sshll.u32 [#allocation2], 4
      %s15 = int_to_ptr.vmem [resolvable:$true] %s14
      %17 = dma.hbm_to_vmem [thread:$0]  %s0, 256, %s15, [#allocation3]
    $region5: #{tpu_custom_call.1} parent=1 // pred_fallthru
      _
    // Predicated region
    $region6: #{tpu_custom_call.1} parent=1 // pred_check
      _
    $region7: #{tpu_custom_call.1} parent=1 // pred_check_branch
      %19 = sbr.rel (0) target = $region9
    $region8: #{tpu_custom_call.1} parent=1 // pred_region
      %20 = dma.done [#allocation3], 256
    $region9: #{tpu_custom_call.1} parent=1 // pred_fallthru
      _
    %v21 = vld [vmem:[#allocation2] sm:$0xff]
    %v22 = vld [vmem:[#allocation2 + $0x8] sm:$0xff]
    %v23 = vmul.f32 %v21, 6.0
    %v24 = vmul.f32 %v22, 6.0
    %v25 = vmax.f32 %v23, 0.0
    %v26 = vmax.f32 %v24, 0.0
    %v27 = vmin.f32 %v25, 6.0
    %v28 = vmin.f32 %v26, 6.0
    %v29 = vmul.f32 %v27, 0.16666667
    %v30 = vmul.f32 %v28, 0.16666667
    %31 = vst [vmem:[#allocation5] sm:$0xff] %v29
    %32 = vst [vmem:[#allocation5 + $0x8] sm:$0xff] %v30
    // Predicated region
    $region10: #{tpu_custom_call.1} parent=1 // pred_check
      _
    $region11: #{tpu_custom_call.1} parent=1 // pred_check_branch
      %34 = sbr.rel (0) target = $region13
    $region12: #{tpu_custom_call.1} parent=1 // pred_region
      %s36 = ssub.s32 256, 256
      %37 = vsyncadd [#allocation4], %s36
      %s39 = sshll.u32 [#allocation5], 4
      %s40 = int_to_ptr.vmem [resolvable:$true] %s39
      %42 = dma.vmem_to_hbm [thread:$0]  %s40, 256, %s1, [#allocation4]
    $region13: #{tpu_custom_call.1} parent=1 // pred_fallthru
      _
    // Predicated region
    $region14: #{tpu_custom_call.1} parent=1 // pred_check
      _
    $region15: #{tpu_custom_call.1} parent=1 // pred_check_branch
      %44 = sbr.rel (0) target = $region17
    $region16: #{tpu_custom_call.1} parent=1 // pred_region
      %45 = dma.done [#allocation4], 256
    $region17: #{tpu_custom_call.1} parent=1 // pred_fallthru
      _
    %46 = vsyncpa [#allocation3], 1
    %47 = vsyncpa [#allocation4], 1

</llo_original>
